<compile_context>
chip_gen: v6e
topology: v6e:2x2x1
jax: 0.10.0
libtpu: 0.0.40
codegen_flags: <defaults>
</compile_context>

<pallas_src>
import jax
import jax.numpy as jnp
from jax.experimental import pallas as pl
from jax.experimental.pallas import tpu as pltpu


def _round_up(x, m):
    return ((x + m - 1) // m) * m


def _make_char_cnn_kernel(n_f, C, T_pad, has_proj, out_dim, out_pad):
    blk = T_pad * C  # per-filter column block width in the fused matmul output

    def kernel(x_ref, w_ref, cb_ref, fb_ref, *refs):
        if has_proj:
            wp_ref, bp_ref, out_ref = refs
        else:
            (out_ref,) = refs

        # Single fused MXU matmul covering all filters / shifts / time steps:
        #   (tile_b, T*E) bf16  @  (T*E, n_f*T_pad*C) bf16  -> f32
        y = jnp.dot(x_ref[...], w_ref[...],
                    preferred_element_type=jnp.float32)
        # conv bias (pre-ReLU, matching the PyTorch Conv2d) + ReLU.
        # Invalid/padded time columns: 0 weight + 0 bias -> relu(0)=0, which
        # never wins the max below since valid ReLU outputs are >= 0.
        y = jnp.maximum(y + cb_ref[...], 0.0)          # (tile_b, n_f*T_pad*C)

        # Max over time per filter: log2(T_pad) lane-fold steps.  The first
        # folds are whole-vreg aligned because blk = T_pad * C.
        maxes = []
        for i in range(n_f):
            m = y[:, i * blk:(i + 1) * blk]
            t_cur = T_pad
            while t_cur > 1:
                half = t_cur // 2
                m = jnp.maximum(m[:, :half * C], m[:, half * C:t_cur * C])
                t_cur = half
            maxes.append(m)                            # (tile_b, C)

        # Post-activation per-filter bias (constant add commutes with the max).
        phi = jnp.concatenate(maxes, axis=-1) + fb_ref[...]   # (tile_b, n_f*C)

        if has_proj:
            # proj weights were zero-padded to out_pad columns host-side, so
            # this is already a lane-dense (tile_b, out_pad) result.
            out = jnp.dot(phi, wp_ref[...],
                          preferred_element_type=jnp.float32) + bp_ref[...]
        else:
            pad = out_pad - out_dim
            if pad:
                out = jnp.concatenate(
                    [phi, jnp.zeros((phi.shape[0], pad), phi.dtype)], axis=-1)
            else:
                out = phi

        out_ref[...] = out.astype(out_ref.dtype)       # single lane-dense store

    return kernel


def _pack_conv_weights(params, filter_sizes, T, E, C, T_pad, compute_dtype):
    """Build the block-structured conv weight (T*E, n_f*T_pad*C) and the
    matching per-column conv-bias row (1, n_f*T_pad*C).  Pure layout work,
    done once host-side."""
    K = T * E
    zero_col_w = jnp.zeros((K, C), jnp.float32)
    zero_col_b = jnp.zeros((1, C), jnp.float32)
    w_blocks, b_blocks = [], []
    for i, k in enumerate(filter_sizes):
        w_i = params["conv_w"][i].astype(jnp.float32).reshape(k * E, C)
        cb_i = params["conv_b"][i].astype(jnp.float32)        # (1, C)
        t_out = T - k + 1
        for t in range(T_pad):
            if t < t_out:
                w_blocks.append(zero_col_w.at[t * E:(t + k) * E, :].set(w_i))
                b_blocks.append(cb_i)
            else:                                             # invalid / padded time
                w_blocks.append(zero_col_w)
                b_blocks.append(zero_col_b)
    w_struct = jnp.concatenate(w_blocks, axis=1).astype(compute_dtype)
    cb_cols = jnp.concatenate(b_blocks, axis=1)               # f32
    return w_struct, cb_cols


def char_cnn_forward(x, params, filter_sizes, *, tile_b=None,
                     compute_dtype=jnp.bfloat16, interpret=False):
    """x: (B, T, E) float32.  Returns (B, C) if the proj exists else (B, n_f*C)."""
    B, T, E = x.shape
    n_f = len(filter_sizes)
    C = params["conv_w"][0].shape[-1]
    has_proj = "proj_w" in params
    out_dim = C if has_proj else C * n_f
    out_pad = _round_up(out_dim, 128)           # lane-dense output slab
    T_pad = max(1, pl.next_power_of_2(T))       # power-of-two time pad -> clean folds
    K = T * E

    # ---- host-side weight packing (done once) ----
    w_struct, cb_cols = _pack_conv_weights(
        params, filter_sizes, T, E, C, T_pad, compute_dtype)
    fb_packed = jnp.repeat(params["filter_bias"].astype(jnp.float32), C)[None, :]

    # Lane-dense bf16 input stream: (B, T*E).
    x2 = x.reshape(B, K).astype(compute_dtype)

    # ---- batch tiling ----
    if tile_b is None:
        b8 = _round_up(B, 8)
        if b8 <= 16:
            tile_b = b8                          # tiny batch: single step
        else:
            # Cap at 1024 rows (fits v7x's 64 MiB VMEM comfortably with the
            # lane-dense layout) and keep >= 2 grid steps so v7x's two
            # TensorCores both get work; on v5e/v6e the extra step costs
            # only ~0.35 us.
            tile_b = min(1024, _round_up(pl.cdiv(b8, 2), 8))
    tile_b = _round_up(tile_b, 8)
    b_pad = _round_up(B, tile_b)
    if b_pad != B:
        x2 = jnp.pad(x2, ((0, b_pad - B), (0, 0)))
    grid = (b_pad // tile_b,)

    inputs = [x2, w_struct, cb_cols, fb_packed]
    in_specs = [
        pl.BlockSpec((tile_b, K), lambda b: (b, 0)),            # only tiled stream
        pl.BlockSpec(w_struct.shape, lambda b: (0, 0)),         # resident weights
        pl.BlockSpec(cb_cols.shape, lambda b: (0, 0)),
        pl.BlockSpec(fb_packed.shape, lambda b: (0, 0)),
    ]

    flops = 2 * b_pad * K * int(w_struct.shape[1])
    bytes_accessed = (int(x2.size) * x2.dtype.itemsize
                      + int(w_struct.size) * w_struct.dtype.itemsize
                      + int(cb_cols.size) * 4 + int(fb_packed.size) * 4
                      + b_pad * out_pad * 4)

    if has_proj:
        wp = jnp.pad(params["proj_w"].astype(jnp.float32),
                     ((0, 0), (0, out_pad - C)))
        bp = jnp.pad(params["proj_b"].astype(jnp.float32),
                     ((0, 0), (0, out_pad - C)))
        inputs += [wp, bp]
        in_specs += [pl.BlockSpec(wp.shape, lambda b: (0, 0)),
                     pl.BlockSpec(bp.shape, lambda b: (0, 0))]
        flops += 2 * b_pad * (n_f * C) * out_pad
        bytes_accessed += int(wp.size) * 4 + int(bp.size) * 4

    kernel = _make_char_cnn_kernel(n_f, C, T_pad, has_proj, out_dim, out_pad)
    out = pl.pallas_call(
        kernel,
        out_shape=jax.ShapeDtypeStruct((b_pad, out_pad), jnp.float32),
        grid=grid,
        in_specs=in_specs,
        out_specs=pl.BlockSpec((tile_b, out_pad), lambda b: (b, 0)),
        compiler_params=pltpu.CompilerParams(
            dimension_semantics=("parallel",),
            # Above v5e's 16 MiB scoped default, under v7x's 64 MiB physical.
            vmem_limit_bytes=48 * 1024 * 1024,
        ),
        cost_estimate=pl.CostEstimate(
            flops=flops, transcendentals=0, bytes_accessed=bytes_accessed),
        interpret=interpret,
    )(*inputs)
    return out[:B, :out_dim]


def ref_forward(x, params, filter_sizes):
    """Pure-JAX reference mirroring the PyTorch forward (eval mode)."""
    x = x.astype(jnp.float32)
    outs = []
    for i, k in enumerate(filter_sizes):
        w = params["conv_w"][i]            # (k, E, C)
        cb = params["conv_b"][i]           # (1, C)
        t_out = x.shape[1] - k + 1
        conv = sum(
            jnp.einsum("bte,ec->btc", x[:, j:j + t_out, :], w[j])
            for j in range(k)) + cb
        enc = jnp.maximum(conv, 0.0) + params["filter_bias"][i]
        outs.append(jnp.max(enc, axis=1))  # max over time
    phi = jnp.concatenate(outs, axis=-1)
    if "proj_w" in params:
        phi = phi @ params["proj_w"] + params["proj_b"]
    return phi


if __name__ == "__main__":
    # opt: char_emb_size=8, char_enc_size=16, char_filters="2,3", eval mode.
    B, T, E, C = 2, 16, 8, 16
    filter_sizes = [2, 3]
    n_f = len(filter_sizes)

    key = jax.random.PRNGKey(0)
    keys = jax.random.split(key, 2 * n_f + 4)

    params = {
        # Conv2d(E, C, (1, k)) weight (C, E, 1, k) pre-permuted to (k, E, C)
        "conv_w": [0.1 * jax.random.normal(keys[2 * i], (k, E, C), jnp.float32)
                   for i, k in enumerate(filter_sizes)],
        "conv_b": [0.1 * jax.random.normal(keys[2 * i + 1], (1, C), jnp.float32)
                   for i in range(n_f)],
        # Zeros in the PyTorch __init__; random here to exercise the add path.
        "filter_bias": 0.1 * jax.random.normal(keys[2 * n_f], (n_f,), jnp.float32),
    }
    if n_f * C != C:  # proj exists iff post_conv_size != char_enc_size
        # Linear(n_f*C, C): weight stored pre-transposed as (n_f*C, C)
        params["proj_w"] = 0.1 * jax.random.normal(
            keys[2 * n_f + 1], (n_f * C, C), jnp.float32)
        params["proj_b"] = 0.1 * jax.random.normal(
            keys[2 * n_f + 2], (1, C), jnp.float32)

    x = jax.random.normal(keys[2 * n_f + 3], (B, T, E), jnp.float32)

    out = jax.block_until_ready(char_cnn_forward(x, params, filter_sizes))
    ref = ref_forward(x, params, filter_sizes)
    assert out.shape == (B, C), out.shape
    # bf16 streaming of x / conv weights -> slightly looser tolerance vs f32 ref
    assert jnp.allclose(out, ref, rtol=2e-2, atol=2e-2), (out, ref)

    # Exercise the multi-tile grid + batch-padding path as well.
    xb = jax.random.normal(jax.random.PRNGKey(1), (70, T, E), jnp.float32)
    outb = jax.block_until_ready(char_cnn_forward(xb, params, filter_sizes))
    refb = ref_forward(xb, params, filter_sizes)
    assert outb.shape == (70, C), outb.shape
    assert jnp.allclose(outb, refb, rtol=2e-2, atol=2e-2)

    print("KERNEL_OK")
</pallas_src>

<mosaic_0001>
module attributes {stable_mosaic.version = 11 : i64} {
  func.func @kernel(%arg0: i32, %arg1: memref<8x128xbf16, #tpu.memory_space<vmem>>, %arg2: memref<128x512xbf16, #tpu.memory_space<vmem>>, %arg3: memref<1x512xf32, #tpu.memory_space<vmem>>, %arg4: memref<1x32xf32, #tpu.memory_space<vmem>>, %arg5: memref<32x128xf32, #tpu.memory_space<vmem>>, %arg6: memref<1x128xf32, #tpu.memory_space<vmem>>, %arg7: memref<8x128xf32, #tpu.memory_space<vmem>>) attributes {dimension_semantics = [#tpu.dimension_semantics<parallel>], iteration_bounds = array<i64: 1>, scalar_prefetch = 0 : i64, scratch_operands = 0 : i64, tpu.core_type = #tpu.core_type<tc>, window_params = [{transform_indices = @transform_0, window_bounds = array<i64: 8, 128>}, {pipeline_mode = #tpu.pipeline_mode<synchronous>, transform_indices = @transform_1, window_bounds = array<i64: 128, 512>}, {pipeline_mode = #tpu.pipeline_mode<synchronous>, transform_indices = @transform_2, window_bounds = array<i64: 1, 512>}, {pipeline_mode = #tpu.pipeline_mode<synchronous>, transform_indices = @transform_3, window_bounds = array<i64: 1, 32>}, {pipeline_mode = #tpu.pipeline_mode<synchronous>, transform_indices = @transform_4, window_bounds = array<i64: 32, 128>}, {pipeline_mode = #tpu.pipeline_mode<synchronous>, transform_indices = @transform_5, window_bounds = array<i64: 1, 128>}, {transform_indices = @transform_6, window_bounds = array<i64: 8, 128>}]} {
    %c0 = arith.constant 0 : index
    %c0_0 = arith.constant 0 : index
    %0 = vector.load %arg1[%c0, %c0_0] : memref<8x128xbf16, #tpu.memory_space<vmem>>, vector<8x128xbf16>
    %c0_1 = arith.constant 0 : index
    %c0_2 = arith.constant 0 : index
    %1 = vector.load %arg2[%c0_1, %c0_2] : memref<128x512xbf16, #tpu.memory_space<vmem>>, vector<128x512xbf16>
    %cst = arith.constant dense<0.000000e+00> : vector<8x512xf32>
    %2 = tpu.matmul %0, %1, %cst {dimension_numbers = #tpu.dot_dimension_numbers<[1], [0], [0], [1], [0, 0, 1, 1], [], []>} : vector<8x128xbf16>, vector<128x512xbf16>, vector<8x512xf32> -> vector<8x512xf32>
    %c0_3 = arith.constant 0 : index
    %c0_4 = arith.constant 0 : index
    %3 = vector.load %arg3[%c0_3, %c0_4] : memref<1x512xf32, #tpu.memory_space<vmem>>, vector<1x512xf32>
    %4 = vector.broadcast %3 : vector<1x512xf32> to vector<8x512xf32>
    %5 = arith.addf %2, %4 : vector<8x512xf32>
    %cst_5 = arith.constant 0.000000e+00 : f32
    %6 = vector.broadcast %cst_5 : f32 to vector<8x512xf32>
    %7 = arith.maximumf %5, %6 : vector<8x512xf32>
    %8 = vector.extract_strided_slice %7 {offsets = [0, 0], sizes = [8, 256], strides = [1, 1]} : vector<8x512xf32> to vector<8x256xf32>
    %9 = vector.extract_strided_slice %8 {offsets = [0, 0], sizes = [8, 128], strides = [1, 1]} : vector<8x256xf32> to vector<8x128xf32>
    %10 = vector.extract_strided_slice %8 {offsets = [0, 128], sizes = [8, 128], strides = [1, 1]} : vector<8x256xf32> to vector<8x128xf32>
    %11 = arith.maximumf %9, %10 : vector<8x128xf32>
    %12 = vector.extract_strided_slice %11 {offsets = [0, 0], sizes = [8, 64], strides = [1, 1]} : vector<8x128xf32> to vector<8x64xf32>
    %13 = vector.extract_strided_slice %11 {offsets = [0, 64], sizes = [8, 64], strides = [1, 1]} : vector<8x128xf32> to vector<8x64xf32>
    %14 = arith.maximumf %12, %13 : vector<8x64xf32>
    %15 = vector.extract_strided_slice %14 {offsets = [0, 0], sizes = [8, 32], strides = [1, 1]} : vector<8x64xf32> to vector<8x32xf32>
    %16 = vector.extract_strided_slice %14 {offsets = [0, 32], sizes = [8, 32], strides = [1, 1]} : vector<8x64xf32> to vector<8x32xf32>
    %17 = arith.maximumf %15, %16 : vector<8x32xf32>
    %18 = vector.extract_strided_slice %17 {offsets = [0, 0], sizes = [8, 16], strides = [1, 1]} : vector<8x32xf32> to vector<8x16xf32>
    %19 = vector.extract_strided_slice %17 {offsets = [0, 16], sizes = [8, 16], strides = [1, 1]} : vector<8x32xf32> to vector<8x16xf32>
    %20 = arith.maximumf %18, %19 : vector<8x16xf32>
    %21 = vector.extract_strided_slice %7 {offsets = [0, 256], sizes = [8, 256], strides = [1, 1]} : vector<8x512xf32> to vector<8x256xf32>
    %22 = vector.extract_strided_slice %21 {offsets = [0, 0], sizes = [8, 128], strides = [1, 1]} : vector<8x256xf32> to vector<8x128xf32>
    %23 = vector.extract_strided_slice %21 {offsets = [0, 128], sizes = [8, 128], strides = [1, 1]} : vector<8x256xf32> to vector<8x128xf32>
    %24 = arith.maximumf %22, %23 : vector<8x128xf32>
    %25 = vector.extract_strided_slice %24 {offsets = [0, 0], sizes = [8, 64], strides = [1, 1]} : vector<8x128xf32> to vector<8x64xf32>
    %26 = vector.extract_strided_slice %24 {offsets = [0, 64], sizes = [8, 64], strides = [1, 1]} : vector<8x128xf32> to vector<8x64xf32>
    %27 = arith.maximumf %25, %26 : vector<8x64xf32>
    %28 = vector.extract_strided_slice %27 {offsets = [0, 0], sizes = [8, 32], strides = [1, 1]} : vector<8x64xf32> to vector<8x32xf32>
    %29 = vector.extract_strided_slice %27 {offsets = [0, 32], sizes = [8, 32], strides = [1, 1]} : vector<8x64xf32> to vector<8x32xf32>
    %30 = arith.maximumf %28, %29 : vector<8x32xf32>
    %31 = vector.extract_strided_slice %30 {offsets = [0, 0], sizes = [8, 16], strides = [1, 1]} : vector<8x32xf32> to vector<8x16xf32>
    %32 = vector.extract_strided_slice %30 {offsets = [0, 16], sizes = [8, 16], strides = [1, 1]} : vector<8x32xf32> to vector<8x16xf32>
    %33 = arith.maximumf %31, %32 : vector<8x16xf32>
    %34 = tpu.concatenate %20, %33 in 1 : vector<8x16xf32>, vector<8x16xf32> -> vector<8x32xf32>
    %c0_6 = arith.constant 0 : index
    %c0_7 = arith.constant 0 : index
    %35 = vector.load %arg4[%c0_6, %c0_7] : memref<1x32xf32, #tpu.memory_space<vmem>>, vector<1x32xf32>
    %36 = vector.broadcast %35 : vector<1x32xf32> to vector<8x32xf32>
    %37 = arith.addf %34, %36 : vector<8x32xf32>
    %c0_8 = arith.constant 0 : index
    %c0_9 = arith.constant 0 : index
    %38 = vector.load %arg5[%c0_8, %c0_9] : memref<32x128xf32, #tpu.memory_space<vmem>>, vector<32x128xf32>
    %cst_10 = arith.constant dense<0.000000e+00> : vector<8x128xf32>
    %39 = tpu.matmul %37, %38, %cst_10 {dimension_numbers = #tpu.dot_dimension_numbers<[1], [0], [0], [1], [0, 0, 1, 1], [], []>} : vector<8x32xf32>, vector<32x128xf32>, vector<8x128xf32> -> vector<8x128xf32>
    %c0_11 = arith.constant 0 : index
    %c0_12 = arith.constant 0 : index
    %40 = vector.load %arg6[%c0_11, %c0_12] : memref<1x128xf32, #tpu.memory_space<vmem>>, vector<1x128xf32>
    %41 = vector.broadcast %40 : vector<1x128xf32> to vector<8x128xf32>
    %42 = arith.addf %39, %41 : vector<8x128xf32>
    %c0_13 = arith.constant 0 : index
    %c0_14 = arith.constant 0 : index
    %43 = vector.load %arg7[%c0_13, %c0_14] : memref<8x128xf32, #tpu.memory_space<vmem>>, vector<8x128xf32>
    tpu.vector_store %arg7[%c0_13, %c0_14], %42 {strides = array<i32>} : memref<8x128xf32, #tpu.memory_space<vmem>>, vector<8x128xf32>,
    return
  }
  func.func @transform_0(%arg0: i32) -> (i32, i32) {
    %c0_i32 = arith.constant 0 : i32
    %c0_i32_0 = arith.constant 0 : i32
    return %arg0, %c0_i32 : i32, i32
  }
  func.func @transform_1(%arg0: i32) -> (i32, i32) {
    %c0_i32 = arith.constant 0 : i32
    %c0_i32_0 = arith.constant 0 : i32
    %c0_i32_1 = arith.constant 0 : i32
    return %c0_i32, %c0_i32_0 : i32, i32
  }
  func.func @transform_2(%arg0: i32) -> (i32, i32) {
    %c0_i32 = arith.constant 0 : i32
    %c0_i32_0 = arith.constant 0 : i32
    %c0_i32_1 = arith.constant 0 : i32
    return %c0_i32, %c0_i32_0 : i32, i32
  }
  func.func @transform_3(%arg0: i32) -> (i32, i32) {
    %c0_i32 = arith.constant 0 : i32
    %c0_i32_0 = arith.constant 0 : i32
    %c0_i32_1 = arith.constant 0 : i32
    return %c0_i32, %c0_i32_0 : i32, i32
  }
  func.func @transform_4(%arg0: i32) -> (i32, i32) {
    %c0_i32 = arith.constant 0 : i32
    %c0_i32_0 = arith.constant 0 : i32
    %c0_i32_1 = arith.constant 0 : i32
    return %c0_i32, %c0_i32_0 : i32, i32
  }
  func.func @transform_5(%arg0: i32) -> (i32, i32) {
    %c0_i32 = arith.constant 0 : i32
    %c0_i32_0 = arith.constant 0 : i32
    %c0_i32_1 = arith.constant 0 : i32
    return %c0_i32, %c0_i32_0 : i32, i32
  }
  func.func @transform_6(%arg0: i32) -> (i32, i32) {
    %c0_i32 = arith.constant 0 : i32
    %c0_i32_0 = arith.constant 0 : i32
    return %arg0, %c0_i32 : i32, i32
  }
}

</mosaic_0001>

<llo_original>
// kernel: tpu_custom_call.1
$region0: #{tpu_custom_call.1}
  #allocation0 [shape = 'u32[]', space=smem, size = 0x4, offset = 0x4, fixed_abs, tag = 'smem constant byte address 0x4 - core index']
  #allocation1 [shape = 'u32[144,128]{1,0:T(1,128)}', space=vmem, size = 0x12000, scoped, tag = 'internal scratch']
  %s0 = inlined_call_operand.hbm [shape: bf16[8,128], index: 0, kind: input, shape index: {}]
  %s1 = inlined_call_operand.hbm [shape: bf16[128,512], index: 1, kind: input, shape index: {}]
  %s2 = inlined_call_operand.hbm [shape: f32[1,512], index: 2, kind: input, shape index: {}]
  %s3 = inlined_call_operand.vmem [shape: f32[1,32], index: 3, kind: input, shape index: {}]
  %s4 = inlined_call_operand.hbm [shape: f32[32,128], index: 4, kind: input, shape index: {}]
  %s5 = inlined_call_operand.vmem [shape: f32[1,128], index: 5, kind: input, shape index: {}]
  %s6 = inlined_call_operand.hbm [shape: f32[8,128], index: 6, kind: output, shape index: {}]
  %s7 = sld [smem:[#allocation0]]
  $region50: #{tpu_custom_call.1} parent=0
    _
  %s9 = ssub.s32 1, %s7
  %s10 = scalar_select 0, %s9, %s7
  $region1: #{tpu_custom_call.1} parent=0
    #allocation2 [shape = 'u8[2048]{0}', space=vmem, size = 0x800, scoped, tag = 'input window, operand 0, single buffered']
    #allocation3 [shape = 's32[1]{0}', space=sflag, size = 0x4, scoped, tag = 'scoped memory for tpu_custom_call.1']
    #allocation4 [shape = 's32[1]{0}', space=sflag, size = 0x4, scoped, tag = 'scoped memory for tpu_custom_call.1']
    #allocation5 [shape = 'u8[131072]{0}', space=vmem, size = 0x20000, scoped, tag = 'input window, operand 1, single buffered']
    #allocation6 [shape = 's32[1]{0}', space=sflag, size = 0x4, scoped, tag = 'scoped memory for tpu_custom_call.1']
    #allocation7 [shape = 'u8[2048]{0}', space=vmem, size = 0x800, scoped, tag = 'input window, operand 2, single buffered']
    #allocation8 [shape = 'u8[16384]{0}', space=vmem, size = 0x4000, scoped, tag = 'input window, operand 4, single buffered']
    #allocation9 [shape = 's32[1]{0}', space=sflag, size = 0x4, scoped, tag = 'scoped memory for tpu_custom_call.1']
    #allocation10 [shape = 'u8[4096]{0}', space=vmem, size = 0x1000, scoped, tag = 'output window, operand 0, single buffered']
    %11 = vsyncpa [#allocation3], 0
    %12 = vsyncpa [#allocation6], 0
    %13 = vsyncpa [#allocation9], 0
    %14 = vsyncpa [#allocation4], 0
    // Predicated region
    $region2: #{tpu_custom_call.1} parent=1 // pred_check
      _
    $region3: #{tpu_custom_call.1} parent=1 // pred_check_branch
      %16 = sbr.rel (0) target = $region5
    $region4: #{tpu_custom_call.1} parent=1 // pred_region
      %s18 = ssub.s32 64, 64
      %19 = vsyncadd [#allocation3], %s18
      %s21 = sshll.u32 [#allocation2], 4
      %s22 = int_to_ptr.vmem [resolvable:$true] %s21
      %24 = dma.hbm_to_vmem [thread:$0]  %s0, 64, %s22, [#allocation3]
    $region5: #{tpu_custom_call.1} parent=1 // pred_fallthru
      _
    // Predicated region
    $region6: #{tpu_custom_call.1} parent=1 // pred_check
      _
    $region7: #{tpu_custom_call.1} parent=1 // pred_check_branch
      %26 = sbr.rel (0) target = $region9
    $region8: #{tpu_custom_call.1} parent=1 // pred_region
      %s28 = ssub.s32 4096, 4096
      %29 = vsyncadd [#allocation6], %s28
      %s30 = sshll.u32 [#allocation5], 4
      %s31 = int_to_ptr.vmem [resolvable:$true] %s30
      %36 = dma.hbm_to_vmem [thread:$0]  %s1, 4096, %s31, [#allocation6], 256, 256, 16
    $region9: #{tpu_custom_call.1} parent=1 // pred_fallthru
      _
    // Predicated region
    $region10: #{tpu_custom_call.1} parent=1 // pred_check
      _
    $region11: #{tpu_custom_call.1} parent=1 // pred_check_branch
      %38 = sbr.rel (0) target = $region13
    $region12: #{tpu_custom_call.1} parent=1 // pred_region
      %s40 = ssub.s32 64, 64
      %41 = vsyncadd [#allocation6], %s40
      %s43 = sshll.u32 [#allocation7], 4
      %s44 = int_to_ptr.vmem [resolvable:$true] %s43
      %46 = dma.hbm_to_vmem [thread:$0]  %s2, 64, %s44, [#allocation6]
    $region13: #{tpu_custom_call.1} parent=1 // pred_fallthru
      _
    // Predicated region
    $region14: #{tpu_custom_call.1} parent=1 // pred_check
      _
    $region15: #{tpu_custom_call.1} parent=1 // pred_check_branch
      %48 = sbr.rel (0) target = $region17
    $region16: #{tpu_custom_call.1} parent=1 // pred_region
      _
    $region17: #{tpu_custom_call.1} parent=1 // pred_fallthru
      _
    // Predicated region
    $region18: #{tpu_custom_call.1} parent=1 // pred_check
      _
    $region19: #{tpu_custom_call.1} parent=1 // pred_check_branch
      %50 = sbr.rel (0) target = $region21
    $region20: #{tpu_custom_call.1} parent=1 // pred_region
      %s52 = ssub.s32 512, 512
      %53 = vsyncadd [#allocation9], %s52
      %s54 = sshll.u32 [#allocation8], 4
      %s55 = int_to_ptr.vmem [resolvable:$true] %s54
      %60 = dma.hbm_to_vmem [thread:$0]  %s4, 512, %s55, [#allocation9], 128, 128, 8
    $region21: #{tpu_custom_call.1} parent=1 // pred_fallthru
      _
    // Predicated region
    $region22: #{tpu_custom_call.1} parent=1 // pred_check
      _
    $region23: #{tpu_custom_call.1} parent=1 // pred_check_branch
      %62 = sbr.rel (0) target = $region25
    $region24: #{tpu_custom_call.1} parent=1 // pred_region
      _
    $region25: #{tpu_custom_call.1} parent=1 // pred_fallthru
      _
    // Predicated region
    $region26: #{tpu_custom_call.1} parent=1 // pred_check
      _
    $region27: #{tpu_custom_call.1} parent=1 // pred_check_branch
      %64 = sbr.rel (0) target = $region29
    $region28: #{tpu_custom_call.1} parent=1 // pred_region
      %65 = dma.done [#allocation3], 64
    $region29: #{tpu_custom_call.1} parent=1 // pred_fallthru
      _
    // Predicated region
    $region30: #{tpu_custom_call.1} parent=1 // pred_check
      _
    $region31: #{tpu_custom_call.1} parent=1 // pred_check_branch
      %67 = sbr.rel (0) target = $region33
    $region32: #{tpu_custom_call.1} parent=1 // pred_region
      %68 = dma.done [#allocation6], 4096
    $region33: #{tpu_custom_call.1} parent=1 // pred_fallthru
      _
    // Predicated region
    $region34: #{tpu_custom_call.1} parent=1 // pred_check
      _
    $region35: #{tpu_custom_call.1} parent=1 // pred_check_branch
      %70 = sbr.rel (0) target = $region37
    $region36: #{tpu_custom_call.1} parent=1 // pred_region
      %71 = dma.done [#allocation6], 64
    $region37: #{tpu_custom_call.1} parent=1 // pred_fallthru
      _
    // Predicated region
    $region38: #{tpu_custom_call.1} parent=1 // pred_check
      _
    $region39: #{tpu_custom_call.1} parent=1 // pred_check_branch
      %73 = sbr.rel (0) target = $region41
    $region40: #{tpu_custom_call.1} parent=1 // pred_region
      %74 = dma.done [#allocation9], 512
    $region41: #{tpu_custom_call.1} parent=1 // pred_fallthru
      _
    %v76 = vld [vmem:[#allocation2] sm:$0xf]
    %v77 = vld [vmem:[#allocation5] sm:$0xff]
    %v78 = vld [vmem:[#allocation5 + $0x8] sm:$0xff]
    %v79 = vld [vmem:[#allocation5 + $0x10] sm:$0xff]
    %v80 = vld [vmem:[#allocation5 + $0x18] sm:$0xff]
    %v81 = vld [vmem:[#allocation5 + $0x20] sm:$0xff]
    %v82 = vld [vmem:[#allocation5 + $0x28] sm:$0xff]
    %v83 = vld [vmem:[#allocation5 + $0x30] sm:$0xff]
    %v84 = vld [vmem:[#allocation5 + $0x38] sm:$0xff]
    %v85 = vld [vmem:[#allocation5 + $0x40] sm:$0xff]
    %v86 = vld [vmem:[#allocation5 + $0x48] sm:$0xff]
    %v87 = vld [vmem:[#allocation5 + $0x50] sm:$0xff]
    %v88 = vld [vmem:[#allocation5 + $0x58] sm:$0xff]
    %v89 = vld [vmem:[#allocation5 + $0x60] sm:$0xff]
    %v90 = vld [vmem:[#allocation5 + $0x68] sm:$0xff]
    %v91 = vld [vmem:[#allocation5 + $0x70] sm:$0xff]
    %v92 = vld [vmem:[#allocation5 + $0x78] sm:$0xff]
    %v93 = vld [vmem:[#allocation5 + $0x80] sm:$0xff]
    %v94 = vld [vmem:[#allocation5 + $0x88] sm:$0xff]
    %v95 = vld [vmem:[#allocation5 + $0x90] sm:$0xff]
    %v96 = vld [vmem:[#allocation5 + $0x98] sm:$0xff]
    %v97 = vld [vmem:[#allocation5 + $0xa0] sm:$0xff]
    %v98 = vld [vmem:[#allocation5 + $0xa8] sm:$0xff]
    %v99 = vld [vmem:[#allocation5 + $0xb0] sm:$0xff]
    %v100 = vld [vmem:[#allocation5 + $0xb8] sm:$0xff]
    %v101 = vld [vmem:[#allocation5 + $0xc0] sm:$0xff]
    %v102 = vld [vmem:[#allocation5 + $0xc8] sm:$0xff]
    %v103 = vld [vmem:[#allocation5 + $0xd0] sm:$0xff]
    %v104 = vld [vmem:[#allocation5 + $0xd8] sm:$0xff]
    %v105 = vld [vmem:[#allocation5 + $0xe0] sm:$0xff]
    %v106 = vld [vmem:[#allocation5 + $0xe8] sm:$0xff]
    %v107 = vld [vmem:[#allocation5 + $0xf0] sm:$0xff]
    %v108 = vld [vmem:[#allocation5 + $0xf8] sm:$0xff]
    %v109 = vld [vmem:[#allocation7] sm:$0xf]
    %v111 = vlaneseq
    %v112 = vshrl.u32 %v111, 7
    %v113 = vsub.s32 0, %v112
    %v114 = vrot.slane %v109, %v113
    %v115 = vlaneseq
    %v116 = vshrl.u32 %v115, 7
    %v117 = vsub.s32 1, %v116
    %v118 = vrot.slane %v109, %v117
    %v119 = vlaneseq
    %v120 = vshrl.u32 %v119, 7
    %v121 = vsub.s32 2, %v120
    %v122 = vrot.slane %v109, %v121
    %v123 = vlaneseq
    %v124 = vshrl.u32 %v123, 7
    %v125 = vsub.s32 3, %v124
    %v126 = vrot.slane %v109, %v125
    %v163 = vunpack.c.l.b16 %v77
    %v164 = vunpack.c.h.b16 %v77
    %v165 = vunpack.c.l.b16 %v78
    %v166 = vunpack.c.h.b16 %v78
    %v167 = vunpack.c.l.b16 %v79
    %v168 = vunpack.c.h.b16 %v79
    %v169 = vunpack.c.l.b16 %v80
    %v170 = vunpack.c.h.b16 %v80
    %v171 = vunpack.c.l.b16 %v81
    %v172 = vunpack.c.h.b16 %v81
    %v173 = vunpack.c.l.b16 %v82
    %v174 = vunpack.c.h.b16 %v82
    %v175 = vunpack.c.l.b16 %v83
    %v176 = vunpack.c.h.b16 %v83
    %v177 = vunpack.c.l.b16 %v84
    %v178 = vunpack.c.h.b16 %v84
    %v179 = vunpack.c.l.b16 %v85
    %v180 = vunpack.c.h.b16 %v85
    %v181 = vunpack.c.l.b16 %v86
    %v182 = vunpack.c.h.b16 %v86
    %v183 = vunpack.c.l.b16 %v87
    %v184 = vunpack.c.h.b16 %v87
    %v185 = vunpack.c.l.b16 %v88
    %v186 = vunpack.c.h.b16 %v88
    %v187 = vunpack.c.l.b16 %v89
    %v188 = vunpack.c.h.b16 %v89
    %v189 = vunpack.c.l.b16 %v90
    %v190 = vunpack.c.h.b16 %v90
    %v191 = vunpack.c.l.b16 %v91
    %v192 = vunpack.c.h.b16 %v91
    %v193 = vunpack.c.l.b16 %v92
    %v194 = vunpack.c.h.b16 %v92
    %v195 = vunpack.c.l.b16 %v93
    %v196 = vunpack.c.h.b16 %v93
    %v197 = vunpack.c.l.b16 %v94
    %v198 = vunpack.c.h.b16 %v94
    %v199 = vunpack.c.l.b16 %v95
    %v200 = vunpack.c.h.b16 %v95
    %v201 = vunpack.c.l.b16 %v96
    %v202 = vunpack.c.h.b16 %v96
    %v203 = vunpack.c.l.b16 %v97
    %v204 = vunpack.c.h.b16 %v97
    %v205 = vunpack.c.l.b16 %v98
    %v206 = vunpack.c.h.b16 %v98
    %v207 = vunpack.c.l.b16 %v99
    %v208 = vunpack.c.h.b16 %v99
    %v209 = vunpack.c.l.b16 %v100
    %v210 = vunpack.c.h.b16 %v100
    %v211 = vunpack.c.l.b16 %v101
    %v212 = vunpack.c.h.b16 %v101
    %v213 = vunpack.c.l.b16 %v102
    %v214 = vunpack.c.h.b16 %v102
    %v215 = vunpack.c.l.b16 %v103
    %v216 = vunpack.c.h.b16 %v103
    %v217 = vunpack.c.l.b16 %v104
    %v218 = vunpack.c.h.b16 %v104
    %v219 = vunpack.c.l.b16 %v105
    %v220 = vunpack.c.h.b16 %v105
    %v221 = vunpack.c.l.b16 %v106
    %v222 = vunpack.c.h.b16 %v106
    %v223 = vunpack.c.l.b16 %v107
    %v224 = vunpack.c.h.b16 %v107
    %v225 = vunpack.c.l.b16 %v108
    %v226 = vunpack.c.h.b16 %v108
    %v227 = vpack.c.b16 %v167, %v163
    %v228 = vpack.c.b16 %v168, %v164
    %v229 = vpack.c.b16 %v169, %v165
    %v230 = vpack.c.b16 %v170, %v166
    %v231 = vpack.c.b16 %v175, %v171
    %v232 = vpack.c.b16 %v176, %v172
    %v233 = vpack.c.b16 %v177, %v173
    %v234 = vpack.c.b16 %v178, %v174
    %v235 = vpack.c.b16 %v183, %v179
    %v236 = vpack.c.b16 %v184, %v180
    %v237 = vpack.c.b16 %v185, %v181
    %v238 = vpack.c.b16 %v186, %v182
    %v239 = vpack.c.b16 %v191, %v187
    %v240 = vpack.c.b16 %v192, %v188
    %v241 = vpack.c.b16 %v193, %v189
    %v242 = vpack.c.b16 %v194, %v190
    %v243 = vpack.c.b16 %v199, %v195
    %v244 = vpack.c.b16 %v200, %v196
    %v245 = vpack.c.b16 %v201, %v197
    %v246 = vpack.c.b16 %v202, %v198
    %v247 = vpack.c.b16 %v207, %v203
    %v248 = vpack.c.b16 %v208, %v204
    %v249 = vpack.c.b16 %v209, %v205
    %v250 = vpack.c.b16 %v210, %v206
    %v251 = vpack.c.b16 %v215, %v211
    %v252 = vpack.c.b16 %v216, %v212
    %v253 = vpack.c.b16 %v217, %v213
    %v254 = vpack.c.b16 %v218, %v214
    %v255 = vpack.c.b16 %v223, %v219
    %v256 = vpack.c.b16 %v224, %v220
    %v257 = vpack.c.b16 %v225, %v221
    %v258 = vpack.c.b16 %v226, %v222
    %291 = vmatprep.subr.bf16.mxu0 %v256
    %292 = vmatpush1.bf16.msra.mxu0 %v255
    %293 = vmatprep.subr.bf16.mxu0 %v252
    %294 = vmatpush1.bf16.msra.mxu0 %v251
    %295 = vmatprep.subr.bf16.mxu0 %v248
    %296 = vmatpush1.bf16.msra.mxu0 %v247
    %297 = vmatprep.subr.bf16.mxu0 %v244
    %298 = vmatpush1.bf16.msra.mxu0 %v243
    %299 = vmatprep.subr.bf16.mxu0 %v240
    %300 = vmatpush1.bf16.msra.mxu0 %v239
    %301 = vmatprep.subr.bf16.mxu0 %v236
    %302 = vmatpush1.bf16.msra.mxu0 %v235
    %303 = vmatprep.subr.bf16.mxu0 %v232
    %304 = vmatpush1.bf16.msra.mxu0 %v231
    %305 = vmatprep.subr.bf16.mxu0 %v228
    %306 = vmatpush1.bf16.msra.mxu0 %v227
    %307 = vmatprep.subr.bf16.mxu0 0
    %308 = vmatpush2.bf16.msra.mxu0 0
    %309 = vmatprep.subr.bf16.mxu0 0
    %310 = vmatpush2.bf16.msra.mxu0 0
    %311 = vmatprep.subr.bf16.mxu0 0
    %312 = vmatpush2.bf16.msra.mxu0 0
    %313 = vmatprep.subr.bf16.mxu0 0
    %314 = vmatpush2.bf16.msra.mxu0 0
    %315 = vmatprep.subr.bf16.mxu0 0
    %316 = vmatpush2.bf16.msra.mxu0 0
    %317 = vmatprep.subr.bf16.mxu0 0
    %318 = vmatpush2.bf16.msra.mxu0 0
    %319 = vmatprep.subr.bf16.mxu0 0
    %320 = vmatpush2.bf16.msra.mxu0 0
    %321 = vmatprep.subr.bf16.mxu0 0
    %322 = vmatpush2.bf16.msra.mxu0 0
    %323 = vmatprep.mubr.bf16.mxu0 0
    %324 = vmatmul.mubr.bf16.gmra.mxu0 %v76
    %v325 = vpop.f32.mrf.mxu0
    %v326 = vadd.f32 %v114, %v325
    %v327 = vpop.f32.mrf.mxu0
    %v328 = vadd.f32 %v118, %v327
    %v329 = vpop.f32.mrf.mxu0
    %v330 = vpop.f32.mrf.mxu0
    %331 = vdwg.mxu0
    %332 = vmatprep.subr.bf16.mxu0 %v258
    %333 = vmatpush1.bf16.msra.mxu0 %v257
    %334 = vmatprep.subr.bf16.mxu0 %v254
    %335 = vmatpush1.bf16.msra.mxu0 %v253
    %336 = vmatprep.subr.bf16.mxu0 %v250
    %337 = vmatpush1.bf16.msra.mxu0 %v249
    %338 = vmatprep.subr.bf16.mxu0 %v246
    %339 = vmatpush1.bf16.msra.mxu0 %v245
    %340 = vmatprep.subr.bf16.mxu0 %v242
    %341 = vmatpush1.bf16.msra.mxu0 %v241
    %342 = vmatprep.subr.bf16.mxu0 %v238
    %343 = vmatpush1.bf16.msra.mxu0 %v237
    %344 = vmatprep.subr.bf16.mxu0 %v234
    %345 = vmatpush1.bf16.msra.mxu0 %v233
    %346 = vmatprep.subr.bf16.mxu0 %v230
    %347 = vmatpush1.bf16.msra.mxu0 %v229
    %348 = vmatprep.subr.bf16.mxu0 0
    %349 = vmatpush2.bf16.msra.mxu0 0
    %350 = vmatprep.subr.bf16.mxu0 0
    %351 = vmatpush2.bf16.msra.mxu0 0
    %352 = vmatprep.subr.bf16.mxu0 0
    %353 = vmatpush2.bf16.msra.mxu0 0
    %354 = vmatprep.subr.bf16.mxu0 0
    %355 = vmatpush2.bf16.msra.mxu0 0
    %356 = vmatprep.subr.bf16.mxu0 0
    %357 = vmatpush2.bf16.msra.mxu0 0
    %358 = vmatprep.subr.bf16.mxu0 0
    %359 = vmatpush2.bf16.msra.mxu0 0
    %360 = vmatprep.subr.bf16.mxu0 0
    %361 = vmatpush2.bf16.msra.mxu0 0
    %362 = vmatprep.subr.bf16.mxu0 0
    %363 = vmatpush2.bf16.msra.mxu0 0
    %364 = vmatprep.mubr.bf16.mxu0 0
    %365 = vmatmul.mubr.bf16.gmra.mxu0 %v76
    %v366 = vpop.f32.mrf.mxu0
    %v367 = vadd.f32 %v122, %v366
    %v368 = vpop.f32.mrf.mxu0
    %v369 = vadd.f32 %v126, %v368
    %v370 = vpop.f32.mrf.mxu0
    %v371 = vpop.f32.mrf.mxu0
    %372 = vdwg.mxu0
    %v373 = vmax.f32 %v326, 0.0
    %v374 = vmax.f32 %v328, 0.0
    %v375 = vmax.f32 %v367, 0.0
    %v376 = vmax.f32 %v369, 0.0
    %v377 = vmax.f32 %v373, %v374
    %379 = vrot.lane.b32.xlu0 %v377, 64
    %v380 = vpop.permute.xlu0 %379
    %v382 = vmax.f32 %v377, %v380
    %384 = vrot.lane.b32.xlu0 %v382, 96
    %v385 = vpop.permute.xlu0 %384
    %v387 = vmax.f32 %v382, %v385
    %389 = vrot.lane.b32.xlu0 %v387, 112
    %v390 = vpop.permute.xlu0 %389
    %v392 = vmax.f32 %v387, %v390
    %v393 = vmax.f32 %v375, %v376
    %395 = vrot.lane.b32.xlu0 %v393, 64
    %v396 = vpop.permute.xlu0 %395
    %v398 = vmax.f32 %v393, %v396
    %400 = vrot.lane.b32.xlu0 %v398, 96
    %v401 = vpop.permute.xlu0 %400
    %v403 = vmax.f32 %v398, %v401
    %405 = vrot.lane.b32.xlu0 %v403, 112
    %v406 = vpop.permute.xlu0 %405
    %v408 = vmax.f32 %v403, %v406
    %410 = vrot.lane.b32.xlu0 %v408, 16
    %v411 = vpop.permute.xlu0 %410
    %vm413 = vcmask 130048
    %v414 = vsel %vm413, %v392, %v411
    %v415 = vld [vmem:[%s3] sm:$0x1]
    %v417 = vlaneseq
    %v418 = vshrl.u32 %v417, 7
    %v419 = vsub.s32 0, %v418
    %v420 = vrot.slane %v415, %v419
    %v422 = vadd.f32 %v414, %v420
    %v423 = vld [vmem:[#allocation8] sm:$0xff]
    %v424 = vld [vmem:[#allocation8 + $0x8] sm:$0xff]
    %v425 = vld [vmem:[#allocation8 + $0x10] sm:$0xff]
    %v426 = vld [vmem:[#allocation8 + $0x18] sm:$0xff]
    %v427 = vld [vmem:[%s5] sm:$0x1]
    %v429 = vlaneseq
    %v430 = vshrl.u32 %v429, 7
    %v431 = vsub.s32 0, %v430
    %v432 = vrot.slane %v427, %v431
    %vm434 = vcmask 261120
    %v436 = vsel %vm434, %v422, 0
    %438 = vmatprep.subr.mxu0 0.0
    %439 = vmatpush1.msra.mxu0 0.0
    %440 = vmatprep.subr.mxu0 0.0
    %441 = vmatpush1.msra.mxu0 0.0
    %442 = vmatprep.subr.mxu0 0.0
    %443 = vmatpush1.msra.mxu0 0.0
    %444 = vmatprep.subr.mxu0 0.0
    %445 = vmatpush1.msra.mxu0 0.0
    %446 = vmatprep.subr.mxu0 0.0
    %447 = vmatpush1.msra.mxu0 0.0
    %448 = vmatprep.subr.mxu0 0.0
    %449 = vmatpush1.msra.mxu0 0.0
    %450 = vmatprep.subr.mxu0 0.0
    %451 = vmatpush1.msra.mxu0 0.0
    %452 = vmatprep.subr.mxu0 0.0
    %453 = vmatpush1.msra.mxu0 0.0
    %454 = vmatprep.subr.mxu0 0.0
    %455 = vmatpush1.msra.mxu0 0.0
    %456 = vmatprep.subr.mxu0 0.0
    %457 = vmatpush1.msra.mxu0 0.0
    %458 = vmatprep.subr.mxu0 0.0
    %459 = vmatpush1.msra.mxu0 0.0
    %460 = vmatprep.subr.mxu0 0.0
    %461 = vmatpush1.msra.mxu0 0.0
    %462 = vmatprep.subr.mxu0 0.0
    %463 = vmatpush1.msra.mxu0 %v426
    %464 = vmatprep.subr.mxu0 0.0
    %465 = vmatpush1.msra.mxu0 %v425
    %466 = vmatprep.subr.mxu0 0.0
    %467 = vmatpush1.msra.mxu0 %v424
    %468 = vmatprep.subr.mxu0 0.0
    %469 = vmatpush1.msra.mxu0 %v423
    %470 = vmatprep.subr.mxu0 0.0
    %471 = vmatpush2.msra.mxu0 0.0
    %472 = vmatprep.subr.mxu0 0.0
    %473 = vmatpush2.msra.mxu0 0.0
    %474 = vmatprep.subr.mxu0 0.0
    %475 = vmatpush2.msra.mxu0 0.0
    %476 = vmatprep.subr.mxu0 0.0
    %477 = vmatpush2.msra.mxu0 0.0
    %478 = vmatprep.subr.mxu0 0.0
    %479 = vmatpush2.msra.mxu0 0.0
    %480 = vmatprep.subr.mxu0 0.0
    %481 = vmatpush2.msra.mxu0 0.0
    %482 = vmatprep.subr.mxu0 0.0
    %483 = vmatpush2.msra.mxu0 0.0
    %484 = vmatprep.subr.mxu0 0.0
    %485 = vmatpush2.msra.mxu0 0.0
    %486 = vmatprep.subr.mxu0 0.0
    %487 = vmatpush2.msra.mxu0 0.0
    %488 = vmatprep.subr.mxu0 0.0
    %489 = vmatpush2.msra.mxu0 0.0
    %490 = vmatprep.subr.mxu0 0.0
    %491 = vmatpush2.msra.mxu0 0.0
    %492 = vmatprep.subr.mxu0 0.0
    %493 = vmatpush2.msra.mxu0 0.0
    %494 = vmatprep.subr.mxu0 0.0
    %495 = vmatpush2.msra.mxu0 0.0
    %496 = vmatprep.subr.mxu0 0.0
    %497 = vmatpush2.msra.mxu0 0.0
    %498 = vmatprep.subr.mxu0 0.0
    %499 = vmatpush2.msra.mxu0 0.0
    %500 = vmatprep.subr.mxu0 0.0
    %501 = vmatpush2.msra.mxu0 0.0
    %502 = vmatprep.mubr.f32.mxu0 0.0
    %503 = vmatmul.mubr.f32.gmra.mxu0 %v436
    %v504 = vpop.f32.mrf.mxu0
    %v505 = vadd.f32 %v432, %v504
    %v506 = vpop.f32.mrf.mxu0
    %507 = vdwg.mxu0
    %508 = vst [vmem:[#allocation10] sm:$0xff] %v505
    // Predicated region
    $region42: #{tpu_custom_call.1} parent=1 // pred_check
      _
    $region43: #{tpu_custom_call.1} parent=1 // pred_check_branch
      %510 = sbr.rel (0) target = $region45
    $region44: #{tpu_custom_call.1} parent=1 // pred_region
      %s512 = ssub.s32 128, 128
      %513 = vsyncadd [#allocation4], %s512
      %s515 = sshll.u32 [#allocation10], 4
      %s516 = int_to_ptr.vmem [resolvable:$true] %s515
      %518 = dma.vmem_to_hbm [thread:$0]  %s516, 128, %s6, [#allocation4]
    $region45: #{tpu_custom_call.1} parent=1 // pred_fallthru
      _
    // Predicated region
    $region46: #{tpu_custom_call.1} parent=1 // pred_check
      _
    $region47: #{tpu_custom_call.1} parent=1 // pred_check_branch
      %520 = sbr.rel (0) target = $region49
    $region48: #{tpu_custom_call.1} parent=1 // pred_region
      %521 = dma.done [#allocation4], 128
    $region49: #{tpu_custom_call.1} parent=1 // pred_fallthru
      _
    %522 = vsyncpa [#allocation3], 1
    %523 = vsyncpa [#allocation6], 1
    %524 = vsyncpa [#allocation9], 1
    %525 = vsyncpa [#allocation4], 1

</llo_original>
